<compile_context>
chip_gen: v7x
topology: tpu7x:2x2x1
jax: 0.10.0
libtpu: 0.0.40
codegen_flags: <defaults>
</compile_context>

<pallas_src>
from functools import partial

import jax
import jax.numpy as jnp
from jax import lax
from jax.experimental import pallas as pl
from jax.experimental.pallas import tpu as pltpu


def _conv3x3_prelu_kernel(x_ref, w_ref, b_ref, alpha_ref, o_ref, *, wp):
    """One batch step: 3x3 same conv (im2col via lane-shifted slices) + bias + PReLU.

    x_ref:     (1, Cin, L)    bf16  row-flattened zero-padded NCHW image (+ tail pad)
    w_ref:     (Cout, 9*Cin)  bf16  tap columns k = (dy, dx, ci)
    b_ref:     (Cout, 1)      f32
    alpha_ref: (1,)           f32   (SMEM) shared PReLU slope
    o_ref:     (1, Cout, Mp)  f32   channel-major conv activation, column m = h*wp + w
    """
    mp = o_ref.shape[2]
    x0 = x_ref[0]                                    # (Cin, L) bf16, single load

    # im2col: each of the 9 taps is a static lane-shifted slice of the row-flattened
    # image (no reshape, no cross-lane relayout). K order (dy, dx, ci) matches w_ref.
    taps = []
    for dy in range(3):
        for dx in range(3):
            off = dy * wp + dx
            taps.append(x0[:, off:off + mp])         # (Cin, Mp) bf16
    slab = jnp.concatenate(taps, axis=0)             # (9*Cin, Mp) bf16

    # One MXU matmul, bf16 operands, f32 accumulation; result is already channel-major
    # and lane-dense (Mp multiple of 128) -> single unmasked store, no transpose.
    acc = jnp.dot(w_ref[...], slab, preferred_element_type=jnp.float32)  # (Cout, Mp)

    acc = acc + b_ref[...]                           # bias, (Cout, 1) broadcast over lanes
    alpha = alpha_ref[0]                             # scalar from SMEM
    o_ref[0] = jnp.where(acc >= 0, acc, acc * alpha).astype(o_ref.dtype)


def _padded_buf_bytes(shape, itemsize):
    """Bytes of one pipeline buffer after TPU (sublane, lane) tile padding."""
    sub = 8 * max(1, 4 // itemsize)
    dims = list(shape)
    dims[-1] = -(-dims[-1] // 128) * 128
    if len(dims) >= 2:
        dims[-2] = -(-dims[-2] // sub) * sub
    n = 1
    for d in dims:
        n *= d
    return n * itemsize


@partial(jax.jit, static_argnames=("up_scale",))
def upsample_block(x_nchw, weight_oihw, bias, alpha, up_scale):
    """Forward of UpsampleBlock. x_nchw: (B, Cin, H, W) f32 -> (B, Cin, H*r, W*r) f32."""
    B, Cin, H, W = x_nchw.shape
    r = int(up_scale)
    Cout = Cin * r * r
    assert weight_oihw.shape == (Cout, Cin, 3, 3)
    # PReLU is applied before the PixelShuffle permutation inside the kernel; that is
    # only equivalent to PyTorch's order because nn.PReLU() uses ONE shared alpha.
    assert jnp.asarray(alpha).size == 1, "kernel assumes a single shared PReLU alpha"

    wp = W + 2                                   # padded row length
    m_valid = H * wp                             # columns holding the real conv outputs
    mp = -(-m_valid // 128) * 128                # pad M so stores are unmasked 128-wide
    L = 2 * wp + 2 + mp                          # last tap offset + slice length

    # Layout glue: pad + flatten rows onto the lane axis + bf16 cast, one cheap XLA pass.
    # Spatial stays lane-dense (no Cin-minor NHWC tile inflation, no transpose pass).
    x_pad = jnp.pad(x_nchw, ((0, 0), (0, 0), (1, 1), (1, 1)))          # (B,Cin,H+2,W+2)
    x_flat = x_pad.reshape(B, Cin, (H + 2) * wp)
    x_flat = jnp.pad(x_flat, ((0, 0), (0, 0), (0, L - (H + 2) * wp)))
    x_flat = x_flat.astype(jnp.bfloat16)

    # (Cout,Cin,3,3) -> (co, ky, kx, ci) -> (Cout, 9*Cin); column order (dy, dx, ci)
    # matches the kernel's tap concatenation. bf16 weights feed the MXU.
    w_pack = jnp.transpose(weight_oihw, (0, 2, 3, 1)).reshape(Cout, 9 * Cin)
    w_pack = w_pack.astype(jnp.bfloat16)
    b2d = bias.reshape(Cout, 1).astype(jnp.float32)
    a1d = jnp.asarray(alpha, jnp.float32).reshape(1)

    # Explicit double-buffered VMEM budget (feedback: re-derive for v7x's 64 MiB).
    # TODO(synk): at production resolutions switch the spatial axis to haloed H-tiles
    # (pl.Element index_map or manual DMA with memory_space=pl.ANY) instead of keeping
    # the whole image resident per step.
    vmem_est = 2 * (_padded_buf_bytes((1, Cin, L), 2)
                    + _padded_buf_bytes((Cout, 9 * Cin), 2)
                    + _padded_buf_bytes((Cout, 1), 4)
                    + _padded_buf_bytes((1, Cout, mp), 4))

    conv = pl.pallas_call(
        partial(_conv3x3_prelu_kernel, wp=wp),
        out_shape=jax.ShapeDtypeStruct((B, Cout, mp), jnp.float32),
        grid_spec=pltpu.PrefetchScalarGridSpec(
            num_scalar_prefetch=0,
            # Whole image per step: exactly B (=2) "parallel" steps -> one per v7x
            # TensorCore; v5e/v6e only pay 2 grid-step overheads, and M >= 256 fills
            # the MXU rows.
            grid=(B,),
            in_specs=[
                pl.BlockSpec((1, Cin, L), lambda b: (b, 0, 0)),
                pl.BlockSpec((Cout, 9 * Cin), lambda b: (0, 0)),
                pl.BlockSpec((Cout, 1), lambda b: (0, 0)),
                pl.BlockSpec(memory_space=pltpu.MemorySpace.SMEM),   # alpha scalar
            ],
            out_specs=pl.BlockSpec((1, Cout, mp), lambda b: (b, 0, 0)),
        ),
        compiler_params=pltpu.CompilerParams(
            dimension_semantics=("parallel",),
            vmem_limit_bytes=max(4 * vmem_est, 8 * 1024 * 1024)),
    )(x_flat, w_pack, b2d, a1d)

    # Drop the 2 junk columns per row, then PixelShuffle (pure permutation; PReLU with
    # the shared scalar alpha was already applied in-kernel, so the order is identical).
    # TODO(synk): fuse this permutation into the kernel store; the rx lane interleave
    # needs an in-kernel relayout Mosaic handles poorly at these tiny channel counts.
    conv = conv[:, :, :m_valid].reshape(B, Cout, H, wp)[:, :, :, :W]   # (B, Cout, H, W)
    y = conv.reshape(B, Cin, r, r, H, W)          # channel co = c*r*r + ry*r + rx
    y = jnp.transpose(y, (0, 1, 4, 2, 5, 3))      # (B, Cin, H, r, W, r)
    return y.reshape(B, Cin, H * r, W * r)


def _reference(x_nchw, weight_oihw, bias, alpha, up_scale):
    """Plain-JAX reference (conv -> pixel shuffle -> prelu), PyTorch semantics."""
    B, Cin, H, W = x_nchw.shape
    r = up_scale
    Cout = Cin * r * r
    y = lax.conv_general_dilated(
        x_nchw, weight_oihw, window_strides=(1, 1), padding=((1, 1), (1, 1)),
        dimension_numbers=("NCHW", "OIHW", "NCHW"),
        precision=lax.Precision.HIGHEST,
    ) + bias.reshape(1, Cout, 1, 1)
    y = y.reshape(B, Cin, r, r, H, W)
    y = jnp.transpose(y, (0, 1, 4, 2, 5, 3)).reshape(B, Cin, H * r, W * r)
    return jnp.where(y >= 0, y, alpha * y)


if __name__ == "__main__":
    # Small shapes consistent with the module: batch=2, in_channels=4, 16x16, up_scale=2.
    B, Cin, H, W, r = 2, 4, 16, 16, 2
    Cout = Cin * r * r

    key = jax.random.PRNGKey(0)
    kx, kw, kb = jax.random.split(key, 3)
    x = jax.random.normal(kx, (B, Cin, H, W), dtype=jnp.float32)
    k = 1.0 / jnp.sqrt(jnp.float32(Cin * 3 * 3))
    weight = jax.random.uniform(kw, (Cout, Cin, 3, 3), jnp.float32, -k, k)
    bias = jax.random.uniform(kb, (Cout,), jnp.float32, -k, k)
    alpha = jnp.float32(0.25)  # PReLU default init (single shared parameter)

    out = jax.block_until_ready(upsample_block(x, weight, bias, alpha, up_scale=r))
    assert out.shape == (B, Cin, H * r, W * r), out.shape

    # The kernel feeds the MXU bf16 operands with f32 accumulation (documented tolerance),
    # so validate against the f32 reference evaluated on bf16-rounded x / weights;
    # remaining differences are summation order only (~1e-6).
    xq = x.astype(jnp.bfloat16).astype(jnp.float32)
    wq = weight.astype(jnp.bfloat16).astype(jnp.float32)
    ref = _reference(xq, wq, bias, alpha, r)
    max_err = float(jnp.max(jnp.abs(out - ref)))
    assert jnp.allclose(out, ref, rtol=1e-3, atol=1e-3), max_err

    print("KERNEL_OK")
</pallas_src>

<mosaic_0001>
module attributes {stable_mosaic.version = 11 : i64} {
  func.func @_conv3x3_prelu_kernel(%arg0: i32, %arg1: memref<1x4x422xbf16, #tpu.memory_space<vmem>>, %arg2: memref<16x36xbf16, #tpu.memory_space<vmem>>, %arg3: memref<16x1xf32, #tpu.memory_space<vmem>>, %arg4: memref<1xf32, #tpu.memory_space<smem>>, %arg5: memref<1x16x384xf32, #tpu.memory_space<vmem>>) attributes {dimension_semantics = [#tpu.dimension_semantics<parallel>], iteration_bounds = array<i64: 2>, scalar_prefetch = 0 : i64, scratch_operands = 0 : i64, tpu.core_type = #tpu.core_type<tc>, window_params = [{transform_indices = @transform_0, window_bounds = array<i64: 1, 4, 422>}, {pipeline_mode = #tpu.pipeline_mode<synchronous>, transform_indices = @transform_1, window_bounds = array<i64: 16, 36>}, {pipeline_mode = #tpu.pipeline_mode<synchronous>, transform_indices = @transform_2, window_bounds = array<i64: 16, 1>}, {transform_indices = @transform_3, window_bounds = array<i64: 1>}, {transform_indices = @transform_4, window_bounds = array<i64: 1, 16, 384>}]} {
    %c0 = arith.constant 0 : index
    %c0_0 = arith.constant 0 : index
    %c0_1 = arith.constant 0 : index
    %0 = vector.load %arg1[%c0, %c0_0, %c0_1] : memref<1x4x422xbf16, #tpu.memory_space<vmem>>, vector<1x4x422xbf16>
    %1 = vector.shape_cast %0 : vector<1x4x422xbf16> to vector<4x422xbf16>
    %2 = vector.extract_strided_slice %1 {offsets = [0, 0], sizes = [4, 384], strides = [1, 1]} : vector<4x422xbf16> to vector<4x384xbf16>
    %3 = vector.extract_strided_slice %1 {offsets = [0, 1], sizes = [4, 384], strides = [1, 1]} : vector<4x422xbf16> to vector<4x384xbf16>
    %4 = vector.extract_strided_slice %1 {offsets = [0, 2], sizes = [4, 384], strides = [1, 1]} : vector<4x422xbf16> to vector<4x384xbf16>
    %5 = vector.extract_strided_slice %1 {offsets = [0, 18], sizes = [4, 384], strides = [1, 1]} : vector<4x422xbf16> to vector<4x384xbf16>
    %6 = vector.extract_strided_slice %1 {offsets = [0, 19], sizes = [4, 384], strides = [1, 1]} : vector<4x422xbf16> to vector<4x384xbf16>
    %7 = vector.extract_strided_slice %1 {offsets = [0, 20], sizes = [4, 384], strides = [1, 1]} : vector<4x422xbf16> to vector<4x384xbf16>
    %8 = vector.extract_strided_slice %1 {offsets = [0, 36], sizes = [4, 384], strides = [1, 1]} : vector<4x422xbf16> to vector<4x384xbf16>
    %9 = vector.extract_strided_slice %1 {offsets = [0, 37], sizes = [4, 384], strides = [1, 1]} : vector<4x422xbf16> to vector<4x384xbf16>
    %10 = vector.extract_strided_slice %1 {offsets = [0, 38], sizes = [4, 384], strides = [1, 1]} : vector<4x422xbf16> to vector<4x384xbf16>
    %11 = tpu.concatenate %2, %3, %4, %5, %6, %7, %8, %9, %10 in 0 : vector<4x384xbf16>, vector<4x384xbf16>, vector<4x384xbf16>, vector<4x384xbf16>, vector<4x384xbf16>, vector<4x384xbf16>, vector<4x384xbf16>, vector<4x384xbf16>, vector<4x384xbf16> -> vector<36x384xbf16>
    %c0_2 = arith.constant 0 : index
    %c0_3 = arith.constant 0 : index
    %12 = vector.load %arg2[%c0_2, %c0_3] : memref<16x36xbf16, #tpu.memory_space<vmem>>, vector<16x36xbf16>
    %cst = arith.constant dense<0.000000e+00> : vector<16x384xf32>
    %13 = tpu.matmul %12, %11, %cst {dimension_numbers = #tpu.dot_dimension_numbers<[1], [0], [0], [1], [0, 0, 1, 1], [], []>} : vector<16x36xbf16>, vector<36x384xbf16>, vector<16x384xf32> -> vector<16x384xf32>
    %c0_4 = arith.constant 0 : index
    %c0_5 = arith.constant 0 : index
    %14 = vector.load %arg3[%c0_4, %c0_5] : memref<16x1xf32, #tpu.memory_space<vmem>>, vector<16x1xf32>
    %15 = vector.broadcast %14 : vector<16x1xf32> to vector<16x384xf32>
    %16 = arith.addf %13, %15 : vector<16x384xf32>
    %c0_6 = arith.constant 0 : index
    %17 = memref.load %arg4[%c0_6] : memref<1xf32, #tpu.memory_space<smem>>
    %cst_7 = arith.constant 0.000000e+00 : f32
    %18 = vector.broadcast %cst_7 : f32 to vector<16x384xf32>
    %19 = arith.cmpf oge, %16, %18 : vector<16x384xf32>
    %20 = vector.broadcast %17 : f32 to vector<16x384xf32>
    %21 = arith.mulf %16, %20 : vector<16x384xf32>
    %22 = arith.select %19, %16, %21 : vector<16x384xi1>, vector<16x384xf32>
    %c0_8 = arith.constant 0 : index
    %c0_9 = arith.constant 0 : index
    %c0_10 = arith.constant 0 : index
    %23 = vector.load %arg5[%c0_8, %c0_9, %c0_10] : memref<1x16x384xf32, #tpu.memory_space<vmem>>, vector<1x16x384xf32>
    %24 = vector.shape_cast %23 : vector<1x16x384xf32> to vector<16x384xf32>
    %25 = vector.shape_cast %22 : vector<16x384xf32> to vector<1x16x384xf32>
    tpu.vector_store %arg5[%c0_8, %c0_9, %c0_10], %25 {strides = array<i32>} : memref<1x16x384xf32, #tpu.memory_space<vmem>>, vector<1x16x384xf32>,
    return
  }
  func.func @transform_0(%arg0: i32) -> (i32, i32, i32) {
    %c0_i32 = arith.constant 0 : i32
    %c0_i32_0 = arith.constant 0 : i32
    %c0_i32_1 = arith.constant 0 : i32
    return %arg0, %c0_i32, %c0_i32_0 : i32, i32, i32
  }
  func.func @transform_1(%arg0: i32) -> (i32, i32) {
    %c0_i32 = arith.constant 0 : i32
    %c0_i32_0 = arith.constant 0 : i32
    %c0_i32_1 = arith.constant 0 : i32
    return %c0_i32, %c0_i32_0 : i32, i32
  }
  func.func @transform_2(%arg0: i32) -> (i32, i32) {
    %c0_i32 = arith.constant 0 : i32
    %c0_i32_0 = arith.constant 0 : i32
    %c0_i32_1 = arith.constant 0 : i32
    return %c0_i32, %c0_i32_0 : i32, i32
  }
  func.func @transform_3(%arg0: i32) -> i32 {
    %c0_i32 = arith.constant 0 : i32
    %c0_i32_0 = arith.constant 0 : i32
    return %c0_i32 : i32
  }
  func.func @transform_4(%arg0: i32) -> (i32, i32, i32) {
    %c0_i32 = arith.constant 0 : i32
    %c0_i32_0 = arith.constant 0 : i32
    %c0_i32_1 = arith.constant 0 : i32
    return %arg0, %c0_i32, %c0_i32_0 : i32, i32, i32
  }
}

</mosaic_0001>

<llo_original>
// kernel: upsample_block.1
$region0: #{upsample_block.1}
  #allocation0 [shape = 'u32[]', space=smem, size = 0x4, offset = 0x4, fixed_abs, tag = 'smem constant byte address 0x4 - core index']
  #allocation1 [shape = 'u32[144,128]{1,0:T(1,128)}', space=vmem, size = 0x12000, scoped, tag = 'internal scratch']
  #allocation2 [shape = 'f32[1]{0:T(128)S(6)}', space=smem, size = 0x200, scoped, tag = 'scoped memory for upsample_block.1']
  %s0 = inlined_call_operand.vmem [shape: bf16[2,4,422], index: 0, kind: input, shape index: {}]
  %s1 = inlined_call_operand.vmem [shape: bf16[16,36], index: 1, kind: input, shape index: {}]
  %s2 = inlined_call_operand.vmem [shape: f32[16,1], index: 2, kind: input, shape index: {}]
  %s3 = inlined_call_operand.<no memory space> [shape: f32[1], index: 3, kind: input, shape index: {}]
  %s4 = inlined_call_operand.vmem [shape: f32[2,16,384], index: 4, kind: output, shape index: {}]
  %s5 = sld [smem:[#allocation0]]
  $region49: #{upsample_block.1} parent=0
    _
  %s7 = ssub.s32 1, %s5
  %s8 = scalar_select 0, %s7, %s5
  %9 = sst [smem:[#allocation2]] %s3
  loop: start=0, step=1, limit=4
  $region2: #{upsample_block.1} parent=0 // loop_pre_header
    _
  $region3: #{upsample_block.1} parent=0 // loop_header
    %s11 = sphi 0, %s15
    %p12 = scmp.ge.s32.totalorder %s11, 4
    %s21 = sphi 0, %s23
    %s24 = sphi 0, %s21
    %s25 = sphi 0, %s24
    %s41 = sphi 0, %s25
    %s45 = sphi 0, %s45
    %s47 = sphi 0, %s45
    %s48 = sphi 0, %s47
    %s62 = sphi 0, %s48
    %s66 = sphi 0, %s66
    %s68 = sphi 0, %s66
    %s69 = sphi 0, %s68
    %s83 = sphi 0, %s69
    %s87 = sphi 0, %s87
    %s89 = sphi 0, %s87
    %s90 = sphi 0, %s89
    %s104 = sphi 0, %s90
    %s110 = sphi 0, %s112
    %s113 = sphi 0, %s110
    %s114 = sphi 0, %s113
    %s130 = sphi 0, %s114
  $region4: #{upsample_block.1} parent=0 // loop_header_branch
    %14 = sbr.rel (%p12) target = $region8
  $region5: #{upsample_block.1} parent=0 // loop_body
    %s16 = ssub.s32 %s11, 1
    %s17 = ssub.s32 %s11, 2
    %s18 = sadd.s32 %s11, 1
    %s19 = ssub.s32 %s11, %s18
    %p20 = scmp.eq.s32.totalorder %s19, 0
    %s22 = sadd.s32 %s21, 1
    %s23 = scalar_select %p20, %s21, %s22
    %p26 = pneg %p20
    %p27 = scmp.eq.s32.totalorder %s11, 1
    %p28 = por %p26, %p27
    %p29 = scmp.ne.s32.totalorder %s21, %s24
    %p30 = scmp.eq.s32.totalorder %s11, 0
    %p31 = por %p29, %p30
    %p32 = scmp.ne.s32.totalorder %s21, %s24
    %p33 = scmp.eq.s32.totalorder %s16, 1
    %p34 = por %p32, %p33
    %p35 = scmp.ne.s32.totalorder %s24, %s25
    %p36 = scmp.eq.s32.totalorder %s16, 0
    %p37 = por %p35, %p36
    %p38 = scmp.ne.s32.totalorder %s24, %s25
    %p39 = scmp.eq.s32.totalorder %s17, 1
    %p40 = por %p38, %p39
    %p42 = scmp.ne.s32.totalorder %s25, %s41
    %p43 = scmp.eq.s32.totalorder %s17, 0
    %p44 = por %p42, %p43
    %s46 = sadd.s32 %s45, 1
    %p49 = scmp.eq.s32.totalorder %s11, 1
    %p50 = scmp.ne.s32.totalorder %s45, %s47
    %p51 = scmp.eq.s32.totalorder %s11, 0
    %p52 = por %p50, %p51
    %p53 = scmp.ne.s32.totalorder %s45, %s47
    %p54 = scmp.eq.s32.totalorder %s16, 1
    %p55 = por %p53, %p54
    %p56 = scmp.ne.s32.totalorder %s47, %s48
    %p57 = scmp.eq.s32.totalorder %s16, 0
    %p58 = por %p56, %p57
    %p59 = scmp.ne.s32.totalorder %s47, %s48
    %p60 = scmp.eq.s32.totalorder %s17, 1
    %p61 = por %p59, %p60
    %p63 = scmp.ne.s32.totalorder %s48, %s62
    %p64 = scmp.eq.s32.totalorder %s17, 0
    %p65 = por %p63, %p64
    %s67 = sadd.s32 %s66, 1
    %p70 = scmp.eq.s32.totalorder %s11, 1
    %p71 = scmp.ne.s32.totalorder %s66, %s68
    %p72 = scmp.eq.s32.totalorder %s11, 0
    %p73 = por %p71, %p72
    %p74 = scmp.ne.s32.totalorder %s66, %s68
    %p75 = scmp.eq.s32.totalorder %s16, 1
    %p76 = por %p74, %p75
    %p77 = scmp.ne.s32.totalorder %s68, %s69
    %p78 = scmp.eq.s32.totalorder %s16, 0
    %p79 = por %p77, %p78
    %p80 = scmp.ne.s32.totalorder %s68, %s69
    %p81 = scmp.eq.s32.totalorder %s17, 1
    %p82 = por %p80, %p81
    %p84 = scmp.ne.s32.totalorder %s69, %s83
    %p85 = scmp.eq.s32.totalorder %s17, 0
    %p86 = por %p84, %p85
    %s88 = sadd.s32 %s87, 1
    %p91 = scmp.eq.s32.totalorder %s11, 1
    %p92 = scmp.ne.s32.totalorder %s87, %s89
    %p93 = scmp.eq.s32.totalorder %s11, 0
    %p94 = por %p92, %p93
    %p95 = scmp.ne.s32.totalorder %s87, %s89
    %p96 = scmp.eq.s32.totalorder %s16, 1
    %p97 = por %p95, %p96
    %p98 = scmp.ne.s32.totalorder %s89, %s90
    %p99 = scmp.eq.s32.totalorder %s16, 0
    %p100 = por %p98, %p99
    %p101 = scmp.ne.s32.totalorder %s89, %s90
    %p102 = scmp.eq.s32.totalorder %s17, 1
    %p103 = por %p101, %p102
    %p105 = scmp.ne.s32.totalorder %s90, %s104
    %p106 = scmp.eq.s32.totalorder %s17, 0
    %p107 = por %p105, %p106
    %s108 = ssub.s32 %s11, %s18
    %p109 = scmp.eq.s32.totalorder %s108, 0
    %s111 = sadd.s32 %s110, 1
    %s112 = scalar_select %p109, %s110, %s111
    %p115 = pneg %p109
    %p116 = scmp.eq.s32.totalorder %s11, 1
    %p117 = por %p115, %p116
    %p118 = scmp.ne.s32.totalorder %s110, %s113
    %p119 = scmp.eq.s32.totalorder %s11, 0
    %p120 = por %p118, %p119
    %p121 = scmp.ne.s32.totalorder %s110, %s113
    %p122 = scmp.eq.s32.totalorder %s16, 1
    %p123 = por %p121, %p122
    %p124 = scmp.ne.s32.totalorder %s113, %s114
    %p125 = scmp.eq.s32.totalorder %s16, 0
    %p126 = por %p124, %p125
    %p127 = scmp.ne.s32.totalorder %s113, %s114
    %p128 = scmp.eq.s32.totalorder %s17, 1
    %p129 = por %p127, %p128
    %p131 = scmp.ne.s32.totalorder %s114, %s130
    %p132 = scmp.eq.s32.totalorder %s17, 0
    %p133 = por %p131, %p132
    %p134 = scmp.le.s32.totalorder 1, %s11
    %p135 = scmp.lt.s32.totalorder %s11, 3
    %p136 = pnand %p134, %p135
    %p137 = pneg %p136
    // Predicated region
    $region9: #{upsample_block.1} parent=5 // pred_check
      _
    $region10: #{upsample_block.1} parent=5 // pred_check_branch
      %139 = sbr.rel (%p136) target = $region12
    $region11: #{upsample_block.1} parent=5 // pred_region
      %s140 = ssub.s32 %s11, 1
      // Predicated region
      $region13: #{upsample_block.1} parent=11 // pred_check
        %p141 = pneg %p58
      $region14: #{upsample_block.1} parent=11 // pred_check_branch
        %143 = sbr.rel (%p141) target = $region16
      $region15: #{upsample_block.1} parent=11 // pred_region
        _
      $region16: #{upsample_block.1} parent=11 // pred_fallthru
        _
      // Predicated region
      $region17: #{upsample_block.1} parent=11 // pred_check
        %p144 = pneg %p79
      $region18: #{upsample_block.1} parent=11 // pred_check_branch
        %146 = sbr.rel (%p144) target = $region20
      $region19: #{upsample_block.1} parent=11 // pred_region
        _
      $region20: #{upsample_block.1} parent=11 // pred_fallthru
        _
      // Predicated region
      $region21: #{upsample_block.1} parent=11 // pred_check
        %p147 = pneg %p100
      $region22: #{upsample_block.1} parent=11 // pred_check_branch
        %149 = sbr.rel (%p147) target = $region24
      $region23: #{upsample_block.1} parent=11 // pred_region
        _
      $region24: #{upsample_block.1} parent=11 // pred_fallthru
        _
    $region12: #{upsample_block.1} parent=5 // pred_fallthru
      _
    %p150 = scmp.lt.s32.totalorder %s11, 2
    // Predicated region
    $region25: #{upsample_block.1} parent=5 // pred_check
      %p151 = pneg %p150
    $region26: #{upsample_block.1} parent=5 // pred_check_branch
      %153 = sbr.rel (%p151) target = $region28
    $region27: #{upsample_block.1} parent=5 // pred_region
      // Predicated region
      $region29: #{upsample_block.1} parent=27 // pred_check
        %p154 = pneg %p31
      $region30: #{upsample_block.1} parent=27 // pred_check_branch
        %156 = sbr.rel (%p154) target = $region32
      $region31: #{upsample_block.1} parent=27 // pred_region
        %p157 = scmp.lt.s32.totalorder %s11, 1
        %s158 = scalar_select %p157, %s11, 1
        %s159 = smul.addr %s158, 4
        %s160 = smul.addr %s159, 2
        %s161 = scalar_lea.vmem %s0, %s160
      $region32: #{upsample_block.1} parent=27 // pred_fallthru
        _
    $region28: #{upsample_block.1} parent=5 // pred_fallthru
      _
    %p162 = scmp.le.s32.totalorder 1, %s11
    %p163 = scmp.lt.s32.totalorder %s11, 3
    %p164 = pnand %p162, %p163
    %p165 = pneg %p164
    // Predicated region
    $region33: #{upsample_block.1} parent=5 // pred_check
      _
    $region34: #{upsample_block.1} parent=5 // pred_check_branch
      %167 = sbr.rel (%p164) target = $region36
    $region35: #{upsample_block.1} parent=5 // pred_region
      %s168 = ssub.s32 %s11, 1
      %p169 = scmp.lt.s32.totalorder %s16, 1
      %s170 = scalar_select %p169, %s16, 1
      %s171 = smul.addr %s170, 4
      %s172 = smul.addr %s171, 2
      %s173 = scalar_lea.vmem %s0, %s172
      %p174 = pneg %p37
      %p175 = pneg %p34
      %p176 = pneg %p58
      %p177 = pneg %p55
      %p178 = pneg %p79
      %p179 = pneg %p76
      %p180 = pneg %p100
      %p181 = pneg %p97
      %p182 = pneg %p126
      %p183 = pneg %p123
      %p184 = scmp.lt.s32.totalorder %s16, 1
      %s185 = scalar_select %p184, %s16, 1
      %s186 = smul.addr %s185, 6
      %s187 = smul.addr %s186, 8
      %s188 = scalar_lea.vmem %s4, %s187
      %p189 = scmp.lt.s32.totalorder %s16, 1
      %s190 = scalar_select %p189, %s16, 1
      %s191 = smul.addr %s190, 4
      %s192 = smul.addr %s191, 2
      %s193 = scalar_lea.vmem %s0, %s192
      %p194 = scmp.lt.s32.totalorder %s16, 1
      %s195 = scalar_select %p194, %s16, 1
      %s196 = smul.addr %s195, 6
      %s197 = smul.addr %s196, 8
      %s198 = scalar_lea.vmem %s4, %s197
      %v200 = vld [vmem:[%s193] sm:$0xff]
      %v202 = vcombine.high %v200, %v200
      %v204 = vunpack.c.l.s4 1983009808
      %v205 = vunpack.c.0.s8 %v204
      %v206 = vlaneseq
      %v207 = vshrl.u32 %v206, 7
      %v208 = vsub.s32 %v205, %v207
      %v209 = vrot.slane %v200, %v208
      %v211 = vunpack.c.l.s4 1983009808
      %v212 = vunpack.c.0.s8 %v211
      %v213 = vlaneseq
      %v214 = vshrl.u32 %v213, 7
      %v215 = vsub.s32 %v212, %v214
      %v216 = vrot.slane %v202, %v215
      %v217 = vcombine.high %v209, %v209
      %v218 = vcombine.low %v200, %v200
      %v220 = vunpack.c.l.s4 1983009808
      %v221 = vunpack.c.0.s8 %v220
      %v222 = vlaneseq
      %v223 = vshrl.u32 %v222, 7
      %v224 = vsub.s32 %v221, %v223
      %v225 = vrot.slane %v218, %v224
      %v226 = vcombine.high %v225, %v225
      %227 = vrot.lane.b32.xlu0 %v225, 127
      %v228 = vpop.permute.xlu0 %227
      %229 = vrot.lane.b32.xlu0 %v226, 127
      %v230 = vpop.permute.xlu0 %229
      %231 = vrot.lane.b32.xlu0 %v209, 127
      %v232 = vpop.permute.xlu0 %231
      %233 = vrot.lane.b32.xlu0 %v217, 127
      %v234 = vpop.permute.xlu0 %233
      %vm235 = vcmask 1039360
      %v236 = vsel %vm235, %v228, %v230
      %v237 = vsel %vm235, %v230, %v232
      %v238 = vsel %vm235, %v232, %v234
      %v239 = vcombine.low %v209, %v209
      %v240 = vcombine.low %v216, %v216
      %241 = vrot.lane.b32.xlu0 %v239, 126
      %v242 = vpop.permute.xlu0 %241
      %243 = vrot.lane.b32.xlu0 %v209, 126
      %v244 = vpop.permute.xlu0 %243
      %245 = vrot.lane.b32.xlu0 %v240, 126
      %v246 = vpop.permute.xlu0 %245
      %247 = vrot.lane.b32.xlu0 %v216, 126
      %v248 = vpop.permute.xlu0 %247
      %vm249 = vcmask 1031168
      %v250 = vsel %vm249, %v242, %v244
      %v251 = vsel %vm249, %v244, %v246
      %v252 = vsel %vm249, %v246, %v248
      %v253 = vcombine.low %v225, %v225
      %254 = vrot.lane.b32.xlu0 %v253, 110
      %v255 = vpop.permute.xlu0 %254
      %256 = vrot.lane.b32.xlu0 %v225, 110
      %v257 = vpop.permute.xlu0 %256
      %258 = vrot.lane.b32.xlu0 %v239, 110
      %v259 = vpop.permute.xlu0 %258
      %260 = vrot.lane.b32.xlu0 %v209, 110
      %v261 = vpop.permute.xlu0 %260
      %vm262 = vcmask 900096
      %v263 = vsel %vm262, %v255, %v257
      %v264 = vsel %vm262, %v257, %v259
      %v265 = vsel %vm262, %v259, %v261
      %v266 = vcombine.high %v216, %v216
      %267 = vrot.lane.b32.xlu0 %v209, 109
      %v268 = vpop.permute.xlu0 %267
      %269 = vrot.lane.b32.xlu0 %v217, 109
      %v270 = vpop.permute.xlu0 %269
      %271 = vrot.lane.b32.xlu0 %v216, 109
      %v272 = vpop.permute.xlu0 %271
      %273 = vrot.lane.b32.xlu0 %v266, 109
      %v274 = vpop.permute.xlu0 %273
      %vm275 = vcmask 891904
      %v276 = vsel %vm275, %v268, %v270
      %v277 = vsel %vm275, %v270, %v272
      %v278 = vsel %vm275, %v272, %v274
      %279 = vrot.lane.b32.xlu0 %v225, 108
      %v280 = vpop.permute.xlu0 %279
      %281 = vrot.lane.b32.xlu0 %v226, 108
      %v282 = vpop.permute.xlu0 %281
      %283 = vrot.lane.b32.xlu0 %v209, 108
      %v284 = vpop.permute.xlu0 %283
      %285 = vrot.lane.b32.xlu0 %v217, 108
      %v286 = vpop.permute.xlu0 %285
      %vm287 = vcmask 883712
      %v288 = vsel %vm287, %v280, %v282
      %v289 = vsel %vm287, %v282, %v284
      %v290 = vsel %vm287, %v284, %v286
      %291 = vrot.lane.b32.xlu0 %v239, 92
      %v292 = vpop.permute.xlu0 %291
      %293 = vrot.lane.b32.xlu0 %v209, 92
      %v294 = vpop.permute.xlu0 %293
      %295 = vrot.lane.b32.xlu0 %v240, 92
      %v296 = vpop.permute.xlu0 %295
      %297 = vrot.lane.b32.xlu0 %v216, 92
      %v298 = vpop.permute.xlu0 %297
      %vm299 = vcmask 752640
      %v300 = vsel %vm299, %v292, %v294
      %v301 = vsel %vm299, %v294, %v296
      %v302 = vsel %vm299, %v296, %v298
      %303 = vrot.lane.b32.xlu0 %v253, 91
      %v304 = vpop.permute.xlu0 %303
      %305 = vrot.lane.b32.xlu0 %v225, 91
      %v306 = vpop.permute.xlu0 %305
      %307 = vrot.lane.b32.xlu0 %v239, 91
      %v308 = vpop.permute.xlu0 %307
      %309 = vrot.lane.b32.xlu0 %v209, 91
      %v310 = vpop.permute.xlu0 %309
      %vm311 = vcmask 744448
      %v312 = vsel %vm311, %v304, %v306
      %v313 = vsel %vm311, %v306, %v308
      %v314 = vsel %vm311, %v308, %v310
      %315 = vrot.lane.b32.xlu0 %v209, 90
      %v316 = vpop.permute.xlu0 %315
      %317 = vrot.lane.b32.xlu0 %v217, 90
      %v318 = vpop.permute.xlu0 %317
      %319 = vrot.lane.b32.xlu0 %v216, 90
      %v320 = vpop.permute.xlu0 %319
      %321 = vrot.lane.b32.xlu0 %v266, 90
      %v322 = vpop.permute.xlu0 %321
      %vm323 = vcmask 736256
      %v324 = vsel %vm323, %v316, %v318
      %v325 = vsel %vm323, %v318, %v320
      %v326 = vsel %vm323, %v320, %v322
      %vm327 = vcmask 1041408
      %v330 = vsel %vm327, %v209, %v236
      %v333 = vsel %vm327, %v217, %v237
      %v336 = vsel %vm327, %v216, %v238
      %vm337 = vcmask 1043456
      %v339 = vsel %vm337, %v330, %v250
      %v341 = vsel %vm337, %v333, %v251
      %v343 = vsel %vm337, %v336, %v252
      %vm344 = vcmask 1045504
      %v346 = vsel %vm344, %v339, %v263
      %v349 = vsel %vm344, %v341, %v264
      %v352 = vsel %vm344, %v343, %v265
      %v356 = vsel %vm327, %v276, %v288
      %v359 = vsel %vm327, %v277, %v289
      %v362 = vsel %vm327, %v278, %v290
      %v364 = vsel %vm337, %v356, %v300
      %v366 = vsel %vm337, %v359, %v301
      %v368 = vsel %vm337, %v362, %v302
      %v370 = vsel %vm344, %v364, %v312
      %v373 = vsel %vm344, %v366, %v313
      %v376 = vsel %vm344, %v368, %v314
      %v378 = vld [vmem:[%s1] sm:$0xf]
      %v379 = vld [vmem:[%s1 + $0x4] sm:$0xf]
      %v380 = vld [vmem:[%s2] sm:$0xff]
      %v381 = vld [vmem:[%s2 + $0x8] sm:$0xff]
      %383 = vset.pattern.permute.xlu0 0
      %384 = vperm.xlu0 %383, %v380
      %v385 = vpop.permute.xlu0 %384
      %388 = vset.pattern.permute.xlu0 0
      %389 = vperm.xlu0 %388, %v381
      %v390 = vpop.permute.xlu0 %389
      %v394 = vunpack.c.l.b16 %v378
      %v395 = vunpack.c.l.b16 %v379
      %v396 = vpack.c.b16 %v395, %v394
      %vm397 = vcmask 293888
      %v399 = vsel %vm397, %v396, 0
      %v402 = vsel %vm327, %v324, 0
      %v405 = vsel %vm327, %v325, 0
      %v408 = vsel %vm327, %v326, 0
      %410 = vmatprep.subr.bf16.mxu0 %v349
      %411 = vmatpush1.bf16.msra.mxu0 %v346
      %412 = vmatprep.subr.bf16.mxu0 %v373
      %413 = vmatpush1.bf16.msra.mxu0 %v370
      %414 = vmatprep.subr.bf16.mxu0 %v405
      %415 = vmatpush1.bf16.msra.mxu0 %v402
      %416 = vmatprep.subr.bf16.mxu0 0
      %417 = vmatpush1.bf16.msra.mxu0 0
      %418 = vmatprep.subr.bf16.mxu0 0
      %419 = vmatpush1.bf16.msra.mxu0 0
      %420 = vmatprep.subr.bf16.mxu0 0
      %421 = vmatpush1.bf16.msra.mxu0 0
      %422 = vmatprep.subr.bf16.mxu0 0
      %423 = vmatpush1.bf16.msra.mxu0 0
      %424 = vmatprep.subr.bf16.mxu0 0
      %425 = vmatpush1.bf16.msra.mxu0 0
      %426 = vmatprep.subr.bf16.mxu0 0
      %427 = vmatpush1.bf16.msra.mxu0 0
      %428 = vmatprep.subr.bf16.mxu0 0
      %429 = vmatpush1.bf16.msra.mxu0 0
      %430 = vmatprep.subr.bf16.mxu0 0
      %431 = vmatpush1.bf16.msra.mxu0 0
      %432 = vmatprep.subr.bf16.mxu0 0
      %433 = vmatpush1.bf16.msra.mxu0 0
      %434 = vmatprep.subr.bf16.mxu0 0
      %435 = vmatpush1.bf16.msra.mxu0 0
      %436 = vmatprep.subr.bf16.mxu0 0
      %437 = vmatpush1.bf16.msra.mxu0 0
      %438 = vmatprep.subr.bf16.mxu0 0
      %439 = vmatpush1.bf16.msra.mxu0 0
      %440 = vmatprep.subr.bf16.mxu0 0
      %441 = vmatpush1.bf16.msra.mxu0 0
      %442 = vmatprep.mubr.bf16.mxu0 0
      %443 = vmatmul.mubr.bf16.gmra.mrb[0].mxu0 %v399
      %v444 = vpop.f32.mrb[0].mxu0
      %v445 = vadd.f32 %v385, %v444
      %v446 = vpop.f32.mrb[0].mxu0
      %v447 = vadd.f32 %v385, %v446
      %v448 = vpop.f32.mrb[0].mxu0
      %v449 = vadd.f32 %v390, %v448
      %v450 = vpop.f32.mrb[0].mxu0
      %v451 = vadd.f32 %v390, %v450
      %452 = vdwg.mxu0
      %453 = vmatprep.subr.bf16.mxu0 0
      %454 = vmatpush1.bf16.msra.mxu0 %v352
      %455 = vmatprep.subr.bf16.mxu0 0
      %456 = vmatpush1.bf16.msra.mxu0 %v376
      %457 = vmatprep.subr.bf16.mxu0 0
      %458 = vmatpush1.bf16.msra.mxu0 %v408
      %459 = vmatprep.subr.bf16.mxu0 0
      %460 = vmatpush1.bf16.msra.mxu0 0
      %461 = vmatprep.subr.bf16.mxu0 0
      %462 = vmatpush1.bf16.msra.mxu0 0
      %463 = vmatprep.subr.bf16.mxu0 0
      %464 = vmatpush1.bf16.msra.mxu0 0
      %465 = vmatprep.subr.bf16.mxu0 0
      %466 = vmatpush1.bf16.msra.mxu0 0
      %467 = vmatprep.subr.bf16.mxu0 0
      %468 = vmatpush1.bf16.msra.mxu0 0
      %469 = vmatprep.subr.bf16.mxu0 0
      %470 = vmatpush1.bf16.msra.mxu0 0
      %471 = vmatprep.subr.bf16.mxu0 0
      %472 = vmatpush1.bf16.msra.mxu0 0
      %473 = vmatprep.subr.bf16.mxu0 0
      %474 = vmatpush1.bf16.msra.mxu0 0
      %475 = vmatprep.subr.bf16.mxu0 0
      %476 = vmatpush1.bf16.msra.mxu0 0
      %477 = vmatprep.subr.bf16.mxu0 0
      %478 = vmatpush1.bf16.msra.mxu0 0
      %479 = vmatprep.subr.bf16.mxu0 0
      %480 = vmatpush1.bf16.msra.mxu0 0
      %481 = vmatprep.subr.bf16.mxu0 0
      %482 = vmatpush1.bf16.msra.mxu0 0
      %483 = vmatprep.subr.bf16.mxu0 0
      %484 = vmatpush1.bf16.msra.mxu0 0
      %485 = vmatprep.mubr.bf16.mxu0 0
      %486 = vmatmul.mubr.bf16.gmra.mrb[0].mxu0 %v399
      %v487 = vpop.f32.mrb[0].mxu0
      %v488 = vadd.f32 %v385, %v487
      %v489 = vpop.f32.mrb[0].mxu0
      %v490 = vpop.f32.mrb[0].mxu0
      %v491 = vadd.f32 %v390, %v490
      %v492 = vpop.f32.mrb[0].mxu0
      %493 = vdwg.mxu0
      %s494 = sld [smem:[#allocation2]]
      %vm495 = vcmp.ge.f32.partialorder %v445, 0.0
      %vm496 = vcmp.ge.f32.partialorder %v447, 0.0
      %vm497 = vcmp.ge.f32.partialorder %v488, 0.0
      %vm498 = vcmp.ge.f32.partialorder %v449, 0.0
      %vm499 = vcmp.ge.f32.partialorder %v451, 0.0
      %vm500 = vcmp.ge.f32.partialorder %v491, 0.0
      %v501 = vstv %s494
      %v502 = vmul.f32 %v445, %v501
      %v503 = vmul.f32 %v447, %v501
      %v504 = vmul.f32 %v488, %v501
      %v505 = vmul.f32 %v449, %v501
      %v506 = vmul.f32 %v451, %v501
      %v507 = vmul.f32 %v491, %v501
      %v508 = vsel %vm495, %v445, %v502
      %v509 = vsel %vm496, %v447, %v503
      %v510 = vsel %vm497, %v488, %v504
      %v511 = vsel %vm498, %v449, %v505
      %v512 = vsel %vm499, %v451, %v506
      %v513 = vsel %vm500, %v491, %v507
      %514 = vst [vmem:[%s198] sm:$0xff] %v508
      %515 = vst [vmem:[%s198 + $0x8] sm:$0xff] %v509
      %516 = vst [vmem:[%s198 + $0x10] sm:$0xff] %v510
      %517 = vst [vmem:[%s198 + $0x18] sm:$0xff] %v511
      %518 = vst [vmem:[%s198 + $0x20] sm:$0xff] %v512
      %519 = vst [vmem:[%s198 + $0x28] sm:$0xff] %v513
      %p520 = scmp.lt.s32.totalorder %s16, 1
      %s521 = scalar_select %p520, %s16, 1
      %s522 = smul.addr %s521, 6
      %s523 = smul.addr %s522, 8
      %s524 = scalar_lea.vmem %s4, %s523
      // Predicated region
      $region37: #{upsample_block.1} parent=35 // pred_check
        %p525 = pneg %p123
      $region38: #{upsample_block.1} parent=35 // pred_check_branch
        %527 = sbr.rel (%p525) target = $region40
      $region39: #{upsample_block.1} parent=35 // pred_region
        _
      $region40: #{upsample_block.1} parent=35 // pred_fallthru
        _
    $region36: #{upsample_block.1} parent=5 // pred_fallthru
      _
    %p528 = scmp.le.s32.totalorder 2, %s11
    // Predicated region
    $region41: #{upsample_block.1} parent=5 // pred_check
      %p529 = pneg %p528
    $region42: #{upsample_block.1} parent=5 // pred_check_branch
      %531 = sbr.rel (%p529) target = $region44
    $region43: #{upsample_block.1} parent=5 // pred_region
      %s532 = ssub.s32 %s11, 2
      // Predicated region
      $region45: #{upsample_block.1} parent=43 // pred_check
        %p533 = pneg %p129
      $region46: #{upsample_block.1} parent=43 // pred_check_branch
        %535 = sbr.rel (%p533) target = $region48
      $region47: #{upsample_block.1} parent=43 // pred_region
        %p536 = scmp.lt.s32.totalorder %s17, 1
        %s537 = scalar_select %p536, %s17, 1
        %s538 = smul.addr %s537, 6
        %s539 = smul.addr %s538, 8
        %s540 = scalar_lea.vmem %s4, %s539
      $region48: #{upsample_block.1} parent=43 // pred_fallthru
        _
    $region44: #{upsample_block.1} parent=5 // pred_fallthru
      _
  $region6: #{upsample_block.1} parent=0 // loop_footer
    %s15 = sadd.s32 1, %s11
  $region7: #{upsample_block.1} parent=0 // loop_footer_branch
    %10 = sbr.rel target = $region3
  $region8: #{upsample_block.1} parent=0 // loop_exit
    _

</llo_original>
